<compile_context>
chip_gen: v6e
topology: v6e:2x2x1
jax: 0.10.0
libtpu: 0.0.40
codegen_flags: <defaults>
</compile_context>

<pallas_src>
import functools

import jax
import jax.numpy as jnp
from jax import lax
from jax.experimental import pallas as pl
from jax.experimental.pallas import tpu as pltpu

block_size = 8
n_embd = 32
num_heads = 4
head_size = n_embd // num_heads  # 8

_LANES = 128


def _round_up(x, m):
    return (x + m - 1) // m * m


def prepare_params(wq, wk, wv, wp, bp):
    """One-time parameter transform (conceptually done at model-load time).

    wq/wk/wv: (nh, C, hs) pre-transposed per-head weights (x @ w).
    wp:       (C, C)      pre-transposed projection weight (cat @ wp).
    bp:       (1, C)      projection bias.

    Returns:
      wqkv:   (C, Kp)  fused [Q heads | K heads | V heads] weight, Q pre-scaled
                       by C**-0.5, zero-padded to a multiple of 128 lanes.
      wp_pad: (C, Np)  projection weight zero-padded to a multiple of 128 lanes.
      bp_pad: (1, Np)  bias zero-padded to match.
    """
    nh, C, hs = wq.shape
    scale = C ** (-0.5)  # NOTE: the PyTorch module scales by n_embd, not head_size.

    def flat(w):  # (nh, C, hs) -> (C, nh*hs), head-major along lanes
        return jnp.transpose(w, (1, 0, 2)).reshape(C, nh * hs)

    wqkv = jnp.concatenate([flat(wq * scale), flat(wk), flat(wv)], axis=1)  # (C, 3*nh*hs)
    kp = _round_up(wqkv.shape[1], _LANES)
    wqkv = jnp.pad(wqkv, ((0, 0), (0, kp - wqkv.shape[1])))

    npad = _round_up(wp.shape[1], _LANES)
    wp_pad = jnp.pad(wp, ((0, 0), (0, npad - wp.shape[1])))
    bp_pad = jnp.pad(bp, ((0, 0), (0, npad - bp.shape[1])))
    return wqkv, wp_pad, bp_pad


def _mha_kernel(x_ref, wqkv_ref, wp_ref, bp_ref, o_ref, *, nh, hs, seq_len):
    x = x_ref[...]                              # (B*T, C) float32
    bt = x.shape[0]

    # --- fused QKV projection: one wide MXU pass --------------------------
    qkv = jnp.dot(x, wqkv_ref[...], preferred_element_type=jnp.float32)  # (B*T, 128)

    # --- additive mask: causal within each length-T segment, and no ------
    # --- cross-batch attention (batches are stacked along rows). ---------
    row = lax.broadcasted_iota(jnp.int32, (bt, bt), 0)
    col = lax.broadcasted_iota(jnp.int32, (bt, bt), 1)
    # seq_len is a power of two -> row % seq_len via bitwise AND (cheap VPU op).
    row_pos = jnp.bitwise_and(row, seq_len - 1)
    allowed = (col <= row) & ((row - col) <= row_pos)
    mask_bias = jnp.where(allowed, 0.0, -1e30)          # finite, no inf/NaN risk

    d = nh * hs
    head_outs = []
    for h in range(nh):
        q = qkv[:, h * hs:(h + 1) * hs]                  # (B*T, hs) — scale pre-folded
        k = qkv[:, d + h * hs:d + (h + 1) * hs]
        v = qkv[:, 2 * d + h * hs:2 * d + (h + 1) * hs]

        # q @ k.T via dot_general (trans_b), no explicit transpose op.
        wei = lax.dot_general(q, k, (((1,), (1,)), ((), ())),
                              preferred_element_type=jnp.float32)  # (B*T, B*T)
        wei = wei + mask_bias

        m = jnp.max(wei, axis=-1, keepdims=True)
        e = jnp.exp(wei - m)
        denom = jnp.sum(e, axis=-1, keepdims=True)
        p = e * pl.reciprocal(denom, approx=True)        # EUP reciprocal, ~free

        head_outs.append(jnp.dot(p, v, preferred_element_type=jnp.float32))  # (B*T, hs)

    cat = jnp.concatenate(head_outs, axis=-1)            # (B*T, nh*hs) == (B*T, C)

    # --- single output projection + one bias add, lane-dense store --------
    y = jnp.dot(cat, wp_ref[...], preferred_element_type=jnp.float32)  # (B*T, 128)
    y = y + bp_ref[...]
    o_ref[...] = y.astype(o_ref.dtype)


def multi_head_attention(x, wqkv, wp_pad, bp_pad, *, nh, hs):
    """x: (B, T, C);  wqkv: (C, Kp);  wp_pad: (C, Np);  bp_pad: (1, Np)."""
    B, T, C = x.shape
    assert (T & (T - 1)) == 0, "seq_len must be a power of two for the mask trick"
    BT = B * T
    Kp = wqkv.shape[1]
    Np = wp_pad.shape[1]

    x2 = x.reshape(BT, C)   # leading-dims-only reshape: free on the wrapper side

    kernel = functools.partial(_mha_kernel, nh=nh, hs=hs, seq_len=T)

    y = pl.pallas_call(
        kernel,
        out_shape=jax.ShapeDtypeStruct((BT, Np), x.dtype),
        grid_spec=pltpu.PrefetchScalarGridSpec(
            num_scalar_prefetch=0,
            grid=(1,),                                       # whole problem in one step
            in_specs=[
                pl.BlockSpec((BT, C), lambda i: (0, 0)),     # x slab
                pl.BlockSpec((C, Kp), lambda i: (0, 0)),     # fused QKV weight
                pl.BlockSpec((C, Np), lambda i: (0, 0)),     # padded proj weight
                pl.BlockSpec((1, Np), lambda i: (0, 0)),     # padded proj bias
            ],
            out_specs=pl.BlockSpec((BT, Np), lambda i: (0, 0)),
        ),
        compiler_params=pltpu.CompilerParams(
            dimension_semantics=("arbitrary",)),
    )(x2, wqkv, wp_pad, bp_pad)

    return y[:, :C].reshape(B, T, C)


def reference(x, wq, wk, wv, wp, bp):
    """Pure-JAX reference matching the PyTorch forward."""
    B, T, C = x.shape
    nh = wq.shape[0]
    heads = []
    row = jnp.arange(T)[:, None]
    col = jnp.arange(T)[None, :]
    causal = col <= row
    for h in range(nh):
        q = x @ wq[h]
        k = x @ wk[h]
        v = x @ wv[h]
        wei = (q @ jnp.swapaxes(k, -1, -2)) * (C ** -0.5)
        wei = jnp.where(causal, wei, -jnp.inf)
        wei = jax.nn.softmax(wei, axis=-1)
        heads.append(wei @ v)
    cat = jnp.concatenate(heads, axis=-1)
    return cat @ wp + bp[0]


if __name__ == "__main__":
    key = jax.random.PRNGKey(0)
    kx, kq, kk, kv, kp, kb = jax.random.split(key, 6)

    B, T, C = 2, block_size, n_embd   # x: (2, 8, 32)

    x = jax.random.normal(kx, (B, T, C), dtype=jnp.float32)

    # per-head weights stored pre-transposed: (num_heads, n_embd, head_size)
    wq = jax.random.normal(kq, (num_heads, C, head_size), dtype=jnp.float32) * 0.1
    wk = jax.random.normal(kk, (num_heads, C, head_size), dtype=jnp.float32) * 0.1
    wv = jax.random.normal(kv, (num_heads, C, head_size), dtype=jnp.float32) * 0.1
    # proj: Linear(n_embd, n_embd) with bias; stored transposed for x @ Wp
    wp = jax.random.normal(kp, (C, C), dtype=jnp.float32) * 0.1
    bp = jax.random.normal(kb, (1, C), dtype=jnp.float32) * 0.1

    # one-time parameter preparation (fused QKV weight, padding, scale folding)
    wqkv, wp_pad, bp_pad = prepare_params(wq, wk, wv, wp, bp)

    out = multi_head_attention(x, wqkv, wp_pad, bp_pad, nh=num_heads, hs=head_size)
    out = jax.block_until_ready(out)

    ref = reference(x, wq, wk, wv, wp, bp)
    assert out.shape == (B, T, C)
    # approx=True EUP reciprocal in the softmax -> slightly looser tolerance
    assert jnp.allclose(out, ref, atol=2e-3, rtol=2e-3), "mismatch vs reference"

    print("KERNEL_OK")
</pallas_src>

<mosaic_0001>
module attributes {stable_mosaic.version = 11 : i64} {
  func.func @_mha_kernel(%arg0: i32, %arg1: memref<16x32xf32, #tpu.memory_space<vmem>>, %arg2: memref<32x128xf32, #tpu.memory_space<vmem>>, %arg3: memref<32x128xf32, #tpu.memory_space<vmem>>, %arg4: memref<1x128xf32, #tpu.memory_space<vmem>>, %arg5: memref<16x128xf32, #tpu.memory_space<vmem>>) attributes {dimension_semantics = [#tpu.dimension_semantics<arbitrary>], iteration_bounds = array<i64: 1>, scalar_prefetch = 0 : i64, scratch_operands = 0 : i64, tpu.core_type = #tpu.core_type<tc>, window_params = [{pipeline_mode = #tpu.pipeline_mode<synchronous>, transform_indices = @transform_0, window_bounds = array<i64: 16, 32>}, {pipeline_mode = #tpu.pipeline_mode<synchronous>, transform_indices = @transform_1, window_bounds = array<i64: 32, 128>}, {pipeline_mode = #tpu.pipeline_mode<synchronous>, transform_indices = @transform_2, window_bounds = array<i64: 32, 128>}, {pipeline_mode = #tpu.pipeline_mode<synchronous>, transform_indices = @transform_3, window_bounds = array<i64: 1, 128>}, {pipeline_mode = #tpu.pipeline_mode<synchronous>, transform_indices = @transform_4, window_bounds = array<i64: 16, 128>}]} {
    %c0 = arith.constant 0 : index
    %c0_0 = arith.constant 0 : index
    %0 = vector.load %arg1[%c0, %c0_0] : memref<16x32xf32, #tpu.memory_space<vmem>>, vector<16x32xf32>
    %c0_1 = arith.constant 0 : index
    %c0_2 = arith.constant 0 : index
    %1 = vector.load %arg2[%c0_1, %c0_2] : memref<32x128xf32, #tpu.memory_space<vmem>>, vector<32x128xf32>
    %cst = arith.constant dense<0.000000e+00> : vector<16x128xf32>
    %2 = tpu.matmul %0, %1, %cst {dimension_numbers = #tpu.dot_dimension_numbers<[1], [0], [0], [1], [0, 0, 1, 1], [], []>} : vector<16x32xf32>, vector<32x128xf32>, vector<16x128xf32> -> vector<16x128xf32>
    %3 = tpu.iota {dimensions = array<i32: 0>} : vector<16x16xi32>
    %4 = tpu.iota {dimensions = array<i32: 1>} : vector<16x16xi32>
    %c7_i32 = arith.constant 7 : i32
    %5 = vector.broadcast %c7_i32 : i32 to vector<16x16xi32>
    %6 = arith.andi %3, %5 : vector<16x16xi32>
    %7 = arith.cmpi sle, %4, %3 : vector<16x16xi32>
    %8 = arith.subi %3, %4 : vector<16x16xi32>
    %9 = arith.cmpi sle, %8, %6 : vector<16x16xi32>
    %10 = arith.andi %7, %9 : vector<16x16xi1>
    %cst_3 = arith.constant 0.000000e+00 : f32
    %cst_4 = arith.constant -1.000000e+30 : f32
    %11 = vector.broadcast %cst_3 : f32 to vector<16x16xf32>
    %12 = vector.broadcast %cst_4 : f32 to vector<16x16xf32>
    %13 = arith.select %10, %11, %12 : vector<16x16xi1>, vector<16x16xf32>
    %14 = vector.extract_strided_slice %2 {offsets = [0, 0], sizes = [16, 8], strides = [1, 1]} : vector<16x128xf32> to vector<16x8xf32>
    %15 = vector.extract_strided_slice %2 {offsets = [0, 32], sizes = [16, 8], strides = [1, 1]} : vector<16x128xf32> to vector<16x8xf32>
    %16 = vector.extract_strided_slice %2 {offsets = [0, 64], sizes = [16, 8], strides = [1, 1]} : vector<16x128xf32> to vector<16x8xf32>
    %cst_5 = arith.constant dense<0.000000e+00> : vector<16x16xf32>
    %17 = tpu.matmul %14, %15, %cst_5 {dimension_numbers = #tpu.dot_dimension_numbers<[1], [1], [0], [0], [0, 0, 1, 0], [], []>} : vector<16x8xf32>, vector<16x8xf32>, vector<16x16xf32> -> vector<16x16xf32>
    %18 = arith.addf %17, %13 : vector<16x16xf32>
    %cst_6 = arith.constant dense<0xFF800000> : vector<16xf32>
    %19 = vector.multi_reduction <maximumf>, %18, %cst_6 [1] : vector<16x16xf32> to vector<16xf32>
    %20 = vector.shape_cast %19 : vector<16xf32> to vector<16x1xf32>
    %21 = vector.broadcast %20 : vector<16x1xf32> to vector<16x16xf32>
    %22 = arith.subf %18, %21 : vector<16x16xf32>
    %23 = math.exp %22 : vector<16x16xf32>
    %cst_7 = arith.constant dense<0.000000e+00> : vector<16xf32>
    %24 = vector.multi_reduction <add>, %23, %cst_7 [1] : vector<16x16xf32> to vector<16xf32>
    %25 = vector.shape_cast %24 : vector<16xf32> to vector<16x1xf32>
    %26 = tpu.reciprocal %25 {approx = true} : vector<16x1xf32> -> vector<16x1xf32>
    %27 = vector.broadcast %26 : vector<16x1xf32> to vector<16x16xf32>
    %28 = arith.mulf %23, %27 : vector<16x16xf32>
    %cst_8 = arith.constant dense<0.000000e+00> : vector<16x8xf32>
    %29 = tpu.matmul %28, %16, %cst_8 {dimension_numbers = #tpu.dot_dimension_numbers<[1], [0], [0], [1], [0, 0, 1, 1], [], []>} : vector<16x16xf32>, vector<16x8xf32>, vector<16x8xf32> -> vector<16x8xf32>
    %30 = vector.extract_strided_slice %2 {offsets = [0, 8], sizes = [16, 8], strides = [1, 1]} : vector<16x128xf32> to vector<16x8xf32>
    %31 = vector.extract_strided_slice %2 {offsets = [0, 40], sizes = [16, 8], strides = [1, 1]} : vector<16x128xf32> to vector<16x8xf32>
    %32 = vector.extract_strided_slice %2 {offsets = [0, 72], sizes = [16, 8], strides = [1, 1]} : vector<16x128xf32> to vector<16x8xf32>
    %cst_9 = arith.constant dense<0.000000e+00> : vector<16x16xf32>
    %33 = tpu.matmul %30, %31, %cst_9 {dimension_numbers = #tpu.dot_dimension_numbers<[1], [1], [0], [0], [0, 0, 1, 0], [], []>} : vector<16x8xf32>, vector<16x8xf32>, vector<16x16xf32> -> vector<16x16xf32>
    %34 = arith.addf %33, %13 : vector<16x16xf32>
    %cst_10 = arith.constant dense<0xFF800000> : vector<16xf32>
    %35 = vector.multi_reduction <maximumf>, %34, %cst_10 [1] : vector<16x16xf32> to vector<16xf32>
    %36 = vector.shape_cast %35 : vector<16xf32> to vector<16x1xf32>
    %37 = vector.broadcast %36 : vector<16x1xf32> to vector<16x16xf32>
    %38 = arith.subf %34, %37 : vector<16x16xf32>
    %39 = math.exp %38 : vector<16x16xf32>
    %cst_11 = arith.constant dense<0.000000e+00> : vector<16xf32>
    %40 = vector.multi_reduction <add>, %39, %cst_11 [1] : vector<16x16xf32> to vector<16xf32>
    %41 = vector.shape_cast %40 : vector<16xf32> to vector<16x1xf32>
    %42 = tpu.reciprocal %41 {approx = true} : vector<16x1xf32> -> vector<16x1xf32>
    %43 = vector.broadcast %42 : vector<16x1xf32> to vector<16x16xf32>
    %44 = arith.mulf %39, %43 : vector<16x16xf32>
    %cst_12 = arith.constant dense<0.000000e+00> : vector<16x8xf32>
    %45 = tpu.matmul %44, %32, %cst_12 {dimension_numbers = #tpu.dot_dimension_numbers<[1], [0], [0], [1], [0, 0, 1, 1], [], []>} : vector<16x16xf32>, vector<16x8xf32>, vector<16x8xf32> -> vector<16x8xf32>
    %46 = vector.extract_strided_slice %2 {offsets = [0, 16], sizes = [16, 8], strides = [1, 1]} : vector<16x128xf32> to vector<16x8xf32>
    %47 = vector.extract_strided_slice %2 {offsets = [0, 48], sizes = [16, 8], strides = [1, 1]} : vector<16x128xf32> to vector<16x8xf32>
    %48 = vector.extract_strided_slice %2 {offsets = [0, 80], sizes = [16, 8], strides = [1, 1]} : vector<16x128xf32> to vector<16x8xf32>
    %cst_13 = arith.constant dense<0.000000e+00> : vector<16x16xf32>
    %49 = tpu.matmul %46, %47, %cst_13 {dimension_numbers = #tpu.dot_dimension_numbers<[1], [1], [0], [0], [0, 0, 1, 0], [], []>} : vector<16x8xf32>, vector<16x8xf32>, vector<16x16xf32> -> vector<16x16xf32>
    %50 = arith.addf %49, %13 : vector<16x16xf32>
    %cst_14 = arith.constant dense<0xFF800000> : vector<16xf32>
    %51 = vector.multi_reduction <maximumf>, %50, %cst_14 [1] : vector<16x16xf32> to vector<16xf32>
    %52 = vector.shape_cast %51 : vector<16xf32> to vector<16x1xf32>
    %53 = vector.broadcast %52 : vector<16x1xf32> to vector<16x16xf32>
    %54 = arith.subf %50, %53 : vector<16x16xf32>
    %55 = math.exp %54 : vector<16x16xf32>
    %cst_15 = arith.constant dense<0.000000e+00> : vector<16xf32>
    %56 = vector.multi_reduction <add>, %55, %cst_15 [1] : vector<16x16xf32> to vector<16xf32>
    %57 = vector.shape_cast %56 : vector<16xf32> to vector<16x1xf32>
    %58 = tpu.reciprocal %57 {approx = true} : vector<16x1xf32> -> vector<16x1xf32>
    %59 = vector.broadcast %58 : vector<16x1xf32> to vector<16x16xf32>
    %60 = arith.mulf %55, %59 : vector<16x16xf32>
    %cst_16 = arith.constant dense<0.000000e+00> : vector<16x8xf32>
    %61 = tpu.matmul %60, %48, %cst_16 {dimension_numbers = #tpu.dot_dimension_numbers<[1], [0], [0], [1], [0, 0, 1, 1], [], []>} : vector<16x16xf32>, vector<16x8xf32>, vector<16x8xf32> -> vector<16x8xf32>
    %62 = vector.extract_strided_slice %2 {offsets = [0, 24], sizes = [16, 8], strides = [1, 1]} : vector<16x128xf32> to vector<16x8xf32>
    %63 = vector.extract_strided_slice %2 {offsets = [0, 56], sizes = [16, 8], strides = [1, 1]} : vector<16x128xf32> to vector<16x8xf32>
    %64 = vector.extract_strided_slice %2 {offsets = [0, 88], sizes = [16, 8], strides = [1, 1]} : vector<16x128xf32> to vector<16x8xf32>
    %cst_17 = arith.constant dense<0.000000e+00> : vector<16x16xf32>
    %65 = tpu.matmul %62, %63, %cst_17 {dimension_numbers = #tpu.dot_dimension_numbers<[1], [1], [0], [0], [0, 0, 1, 0], [], []>} : vector<16x8xf32>, vector<16x8xf32>, vector<16x16xf32> -> vector<16x16xf32>
    %66 = arith.addf %65, %13 : vector<16x16xf32>
    %cst_18 = arith.constant dense<0xFF800000> : vector<16xf32>
    %67 = vector.multi_reduction <maximumf>, %66, %cst_18 [1] : vector<16x16xf32> to vector<16xf32>
    %68 = vector.shape_cast %67 : vector<16xf32> to vector<16x1xf32>
    %69 = vector.broadcast %68 : vector<16x1xf32> to vector<16x16xf32>
    %70 = arith.subf %66, %69 : vector<16x16xf32>
    %71 = math.exp %70 : vector<16x16xf32>
    %cst_19 = arith.constant dense<0.000000e+00> : vector<16xf32>
    %72 = vector.multi_reduction <add>, %71, %cst_19 [1] : vector<16x16xf32> to vector<16xf32>
    %73 = vector.shape_cast %72 : vector<16xf32> to vector<16x1xf32>
    %74 = tpu.reciprocal %73 {approx = true} : vector<16x1xf32> -> vector<16x1xf32>
    %75 = vector.broadcast %74 : vector<16x1xf32> to vector<16x16xf32>
    %76 = arith.mulf %71, %75 : vector<16x16xf32>
    %cst_20 = arith.constant dense<0.000000e+00> : vector<16x8xf32>
    %77 = tpu.matmul %76, %64, %cst_20 {dimension_numbers = #tpu.dot_dimension_numbers<[1], [0], [0], [1], [0, 0, 1, 1], [], []>} : vector<16x16xf32>, vector<16x8xf32>, vector<16x8xf32> -> vector<16x8xf32>
    %78 = tpu.concatenate %29, %45, %61, %77 in 1 : vector<16x8xf32>, vector<16x8xf32>, vector<16x8xf32>, vector<16x8xf32> -> vector<16x32xf32>
    %c0_21 = arith.constant 0 : index
    %c0_22 = arith.constant 0 : index
    %79 = vector.load %arg3[%c0_21, %c0_22] : memref<32x128xf32, #tpu.memory_space<vmem>>, vector<32x128xf32>
    %cst_23 = arith.constant dense<0.000000e+00> : vector<16x128xf32>
    %80 = tpu.matmul %78, %79, %cst_23 {dimension_numbers = #tpu.dot_dimension_numbers<[1], [0], [0], [1], [0, 0, 1, 1], [], []>} : vector<16x32xf32>, vector<32x128xf32>, vector<16x128xf32> -> vector<16x128xf32>
    %c0_24 = arith.constant 0 : index
    %c0_25 = arith.constant 0 : index
    %81 = vector.load %arg4[%c0_24, %c0_25] : memref<1x128xf32, #tpu.memory_space<vmem>>, vector<1x128xf32>
    %82 = vector.broadcast %81 : vector<1x128xf32> to vector<16x128xf32>
    %83 = arith.addf %80, %82 : vector<16x128xf32>
    %c0_26 = arith.constant 0 : index
    %c0_27 = arith.constant 0 : index
    %84 = vector.load %arg5[%c0_26, %c0_27] : memref<16x128xf32, #tpu.memory_space<vmem>>, vector<16x128xf32>
    tpu.vector_store %arg5[%c0_26, %c0_27], %83 {strides = array<i32>} : memref<16x128xf32, #tpu.memory_space<vmem>>, vector<16x128xf32>,
    return
  }
  func.func @transform_0(%arg0: i32) -> (i32, i32) {
    %c0_i32 = arith.constant 0 : i32
    %c0_i32_0 = arith.constant 0 : i32
    %c0_i32_1 = arith.constant 0 : i32
    return %c0_i32, %c0_i32_0 : i32, i32
  }
  func.func @transform_1(%arg0: i32) -> (i32, i32) {
    %c0_i32 = arith.constant 0 : i32
    %c0_i32_0 = arith.constant 0 : i32
    %c0_i32_1 = arith.constant 0 : i32
    return %c0_i32, %c0_i32_0 : i32, i32
  }
  func.func @transform_2(%arg0: i32) -> (i32, i32) {
    %c0_i32 = arith.constant 0 : i32
    %c0_i32_0 = arith.constant 0 : i32
    %c0_i32_1 = arith.constant 0 : i32
    return %c0_i32, %c0_i32_0 : i32, i32
  }
  func.func @transform_3(%arg0: i32) -> (i32, i32) {
    %c0_i32 = arith.constant 0 : i32
    %c0_i32_0 = arith.constant 0 : i32
    %c0_i32_1 = arith.constant 0 : i32
    return %c0_i32, %c0_i32_0 : i32, i32
  }
  func.func @transform_4(%arg0: i32) -> (i32, i32) {
    %c0_i32 = arith.constant 0 : i32
    %c0_i32_0 = arith.constant 0 : i32
    %c0_i32_1 = arith.constant 0 : i32
    return %c0_i32, %c0_i32_0 : i32, i32
  }
}

</mosaic_0001>

<llo_original>
// kernel: tpu_custom_call.1
$region0: #{tpu_custom_call.1}
  #allocation0 [shape = 'u32[]', space=smem, size = 0x4, offset = 0x4, fixed_abs, tag = 'smem constant byte address 0x4 - core index']
  #allocation1 [shape = 'u32[144,128]{1,0:T(1,128)}', space=vmem, size = 0x12000, scoped, tag = 'internal scratch']
  %s0 = inlined_call_operand.hbm [shape: f32[16,32], index: 0, kind: input, shape index: {}]
  %s1 = inlined_call_operand.hbm [shape: f32[32,128], index: 1, kind: input, shape index: {}]
  %s2 = inlined_call_operand.hbm [shape: f32[32,128], index: 2, kind: input, shape index: {}]
  %s3 = inlined_call_operand.vmem [shape: f32[1,128], index: 3, kind: input, shape index: {}]
  %s4 = inlined_call_operand.hbm [shape: f32[16,128], index: 4, kind: output, shape index: {}]
  %s5 = sld [smem:[#allocation0]]
  $region38: #{tpu_custom_call.1} parent=0
    _
  %s7 = ssub.s32 1, %s5
  %s8 = scalar_select 0, %s7, %s5
  $region1: #{tpu_custom_call.1} parent=0
    #allocation2 [shape = 'u8[8192]{0}', space=vmem, size = 0x2000, scoped, tag = 'input window, operand 0, single buffered']
    #allocation3 [shape = 's32[1]{0}', space=sflag, size = 0x4, scoped, tag = 'scoped memory for tpu_custom_call.1']
    #allocation4 [shape = 's32[1]{0}', space=sflag, size = 0x4, scoped, tag = 'scoped memory for tpu_custom_call.1']
    #allocation5 [shape = 'u8[16384]{0}', space=vmem, size = 0x4000, scoped, tag = 'input window, operand 1, single buffered']
    #allocation6 [shape = 's32[1]{0}', space=sflag, size = 0x4, scoped, tag = 'scoped memory for tpu_custom_call.1']
    #allocation7 [shape = 'u8[16384]{0}', space=vmem, size = 0x4000, scoped, tag = 'input window, operand 2, single buffered']
    #allocation8 [shape = 'u8[8192]{0}', space=vmem, size = 0x2000, scoped, tag = 'output window, operand 0, single buffered']
    %9 = vsyncpa [#allocation3], 0
    %10 = vsyncpa [#allocation6], 0
    %11 = vsyncpa [#allocation4], 0
    // Predicated region
    $region2: #{tpu_custom_call.1} parent=1 // pred_check
      _
    $region3: #{tpu_custom_call.1} parent=1 // pred_check_branch
      %13 = sbr.rel (0) target = $region5
    $region4: #{tpu_custom_call.1} parent=1 // pred_region
      %s15 = ssub.s32 256, 256
      %16 = vsyncadd [#allocation3], %s15
      %s17 = sshll.u32 [#allocation2], 4
      %s18 = int_to_ptr.vmem [resolvable:$true] %s17
      %23 = dma.hbm_to_vmem [thread:$0]  %s0, 256, %s18, [#allocation3], 128, 128, 8
    $region5: #{tpu_custom_call.1} parent=1 // pred_fallthru
      _
    // Predicated region
    $region6: #{tpu_custom_call.1} parent=1 // pred_check
      _
    $region7: #{tpu_custom_call.1} parent=1 // pred_check_branch
      %25 = sbr.rel (0) target = $region9
    $region8: #{tpu_custom_call.1} parent=1 // pred_region
      %s27 = ssub.s32 512, 512
      %28 = vsyncadd [#allocation6], %s27
      %s29 = sshll.u32 [#allocation5], 4
      %s30 = int_to_ptr.vmem [resolvable:$true] %s29
      %35 = dma.hbm_to_vmem [thread:$0]  %s1, 512, %s30, [#allocation6], 128, 128, 8
    $region9: #{tpu_custom_call.1} parent=1 // pred_fallthru
      _
    // Predicated region
    $region10: #{tpu_custom_call.1} parent=1 // pred_check
      _
    $region11: #{tpu_custom_call.1} parent=1 // pred_check_branch
      %37 = sbr.rel (0) target = $region13
    $region12: #{tpu_custom_call.1} parent=1 // pred_region
      %s39 = ssub.s32 512, 512
      %40 = vsyncadd [#allocation6], %s39
      %s41 = sshll.u32 [#allocation7], 4
      %s42 = int_to_ptr.vmem [resolvable:$true] %s41
      %47 = dma.hbm_to_vmem [thread:$0]  %s2, 512, %s42, [#allocation6], 128, 128, 8
    $region13: #{tpu_custom_call.1} parent=1 // pred_fallthru
      _
    // Predicated region
    $region14: #{tpu_custom_call.1} parent=1 // pred_check
      _
    $region15: #{tpu_custom_call.1} parent=1 // pred_check_branch
      %49 = sbr.rel (0) target = $region17
    $region16: #{tpu_custom_call.1} parent=1 // pred_region
      _
    $region17: #{tpu_custom_call.1} parent=1 // pred_fallthru
      _
    // Predicated region
    $region18: #{tpu_custom_call.1} parent=1 // pred_check
      _
    $region19: #{tpu_custom_call.1} parent=1 // pred_check_branch
      %51 = sbr.rel (0) target = $region21
    $region20: #{tpu_custom_call.1} parent=1 // pred_region
      %52 = dma.done [#allocation3], 256
    $region21: #{tpu_custom_call.1} parent=1 // pred_fallthru
      _
    // Predicated region
    $region22: #{tpu_custom_call.1} parent=1 // pred_check
      _
    $region23: #{tpu_custom_call.1} parent=1 // pred_check_branch
      %54 = sbr.rel (0) target = $region25
    $region24: #{tpu_custom_call.1} parent=1 // pred_region
      %55 = dma.done [#allocation6], 512
    $region25: #{tpu_custom_call.1} parent=1 // pred_fallthru
      _
    // Predicated region
    $region26: #{tpu_custom_call.1} parent=1 // pred_check
      _
    $region27: #{tpu_custom_call.1} parent=1 // pred_check_branch
      %57 = sbr.rel (0) target = $region29
    $region28: #{tpu_custom_call.1} parent=1 // pred_region
      %58 = dma.done [#allocation6], 512
    $region29: #{tpu_custom_call.1} parent=1 // pred_fallthru
      _
    %v59 = vld [vmem:[#allocation2] sm:$0xff]
    %v60 = vld [vmem:[#allocation2 + $0x8] sm:$0xff]
    %v61 = vld [vmem:[#allocation5] sm:$0xff]
    %v62 = vld [vmem:[#allocation5 + $0x8] sm:$0xff]
    %v63 = vld [vmem:[#allocation5 + $0x10] sm:$0xff]
    %v64 = vld [vmem:[#allocation5 + $0x18] sm:$0xff]
    %vm65 = vcmask 261120
    %v67 = vsel %vm65, %v59, 0
    %v70 = vsel %vm65, %v60, 0
    %72 = vmatprep.subr.mxu0 0.0
    %73 = vmatpush1.msra.mxu0 0.0
    %74 = vmatprep.subr.mxu0 0.0
    %75 = vmatpush1.msra.mxu0 0.0
    %76 = vmatprep.subr.mxu0 0.0
    %77 = vmatpush1.msra.mxu0 0.0
    %78 = vmatprep.subr.mxu0 0.0
    %79 = vmatpush1.msra.mxu0 0.0
    %80 = vmatprep.subr.mxu0 0.0
    %81 = vmatpush1.msra.mxu0 0.0
    %82 = vmatprep.subr.mxu0 0.0
    %83 = vmatpush1.msra.mxu0 0.0
    %84 = vmatprep.subr.mxu0 0.0
    %85 = vmatpush1.msra.mxu0 0.0
    %86 = vmatprep.subr.mxu0 0.0
    %87 = vmatpush1.msra.mxu0 0.0
    %88 = vmatprep.subr.mxu0 0.0
    %89 = vmatpush1.msra.mxu0 0.0
    %90 = vmatprep.subr.mxu0 0.0
    %91 = vmatpush1.msra.mxu0 0.0
    %92 = vmatprep.subr.mxu0 0.0
    %93 = vmatpush1.msra.mxu0 0.0
    %94 = vmatprep.subr.mxu0 0.0
    %95 = vmatpush1.msra.mxu0 0.0
    %96 = vmatprep.subr.mxu0 0.0
    %97 = vmatpush1.msra.mxu0 %v64
    %98 = vmatprep.subr.mxu0 0.0
    %99 = vmatpush1.msra.mxu0 %v63
    %100 = vmatprep.subr.mxu0 0.0
    %101 = vmatpush1.msra.mxu0 %v62
    %102 = vmatprep.subr.mxu0 0.0
    %103 = vmatpush1.msra.mxu0 %v61
    %104 = vmatprep.subr.mxu0 0.0
    %105 = vmatpush2.msra.mxu0 0.0
    %106 = vmatprep.subr.mxu0 0.0
    %107 = vmatpush2.msra.mxu0 0.0
    %108 = vmatprep.subr.mxu0 0.0
    %109 = vmatpush2.msra.mxu0 0.0
    %110 = vmatprep.subr.mxu0 0.0
    %111 = vmatpush2.msra.mxu0 0.0
    %112 = vmatprep.subr.mxu0 0.0
    %113 = vmatpush2.msra.mxu0 0.0
    %114 = vmatprep.subr.mxu0 0.0
    %115 = vmatpush2.msra.mxu0 0.0
    %116 = vmatprep.subr.mxu0 0.0
    %117 = vmatpush2.msra.mxu0 0.0
    %118 = vmatprep.subr.mxu0 0.0
    %119 = vmatpush2.msra.mxu0 0.0
    %120 = vmatprep.subr.mxu0 0.0
    %121 = vmatpush2.msra.mxu0 0.0
    %122 = vmatprep.subr.mxu0 0.0
    %123 = vmatpush2.msra.mxu0 0.0
    %124 = vmatprep.subr.mxu0 0.0
    %125 = vmatpush2.msra.mxu0 0.0
    %126 = vmatprep.subr.mxu0 0.0
    %127 = vmatpush2.msra.mxu0 0.0
    %128 = vmatprep.subr.mxu0 0.0
    %129 = vmatpush2.msra.mxu0 0.0
    %130 = vmatprep.subr.mxu0 0.0
    %131 = vmatpush2.msra.mxu0 0.0
    %132 = vmatprep.subr.mxu0 0.0
    %133 = vmatpush2.msra.mxu0 0.0
    %134 = vmatprep.subr.mxu0 0.0
    %135 = vmatpush2.msra.mxu0 0.0
    %136 = vmatprep.mubr.f32.mxu0 0.0
    %137 = vmatmul.mubr.f32.gmra.mxu0 %v67
    %v138 = vpop.f32.mrf.mxu0
    %v139 = vadd.f32 0.0, %v138
    %v140 = vpop.f32.mrf.mxu0
    %141 = vmatprep.mubr.f32.mxu0 0.0
    %142 = vmatmul.mubr.f32.gmra.mxu0 %v70
    %v143 = vpop.f32.mrf.mxu0
    %v144 = vadd.f32 0.0, %v143
    %v145 = vpop.f32.mrf.mxu0
    %146 = vdwg.mxu0
    %v147 = vlaneseq
    %v148 = vshrl.u32 %v147, 7
    %v149 = vadd.s32 %v148, 8
    %v150 = vlaneseq
    %v151 = vand.u32 %v150, 127
    %v152 = vand.u32 %v148, 7
    %v153 = vand.u32 %v149, 7
    %vm154 = vcmp.le.s32.totalorder %v151, %v148
    %vm155 = vcmp.le.s32.totalorder %v151, %v149
    %v156 = vsub.s32 %v148, %v151
    %v157 = vsub.s32 %v149, %v151
    %vm158 = vcmp.le.s32.totalorder %v156, %v152
    %vm159 = vcmp.le.s32.totalorder %v157, %v153
    %vm160 = vmand %vm154, %vm158
    %vm161 = vmand %vm155, %vm159
    %v162 = vsel %vm160, 0.0, -1e+30
    %v163 = vsel %vm161, 0.0, -1e+30
    %166 = vrot.lane.b32.xlu0 %v139, 96
    %v167 = vpop.permute.xlu0 %166
    %168 = vrot.lane.b32.xlu0 %v144, 96
    %v169 = vpop.permute.xlu0 %168
    %vm170 = vcmask 64512
    %v171 = vsel %vm170, %v139, 0
    %v173 = vsel %vm170, %v144, 0
    %v175 = vsel %vm170, %v167, 0
    %v177 = vsel %vm170, %v169, 0
    %179 = vmatprep.subr.mxu0 0.0
    %180 = vmatpush1.xpose.msra.mxu0 0.0
    %181 = vmatprep.subr.mxu0 0.0
    %182 = vmatpush1.xpose.msra.mxu0 0.0
    %183 = vmatprep.subr.mxu0 0.0
    %184 = vmatpush1.xpose.msra.mxu0 0.0
    %185 = vmatprep.subr.mxu0 0.0
    %186 = vmatpush1.xpose.msra.mxu0 0.0
    %187 = vmatprep.subr.mxu0 0.0
    %188 = vmatpush1.xpose.msra.mxu0 0.0
    %189 = vmatprep.subr.mxu0 0.0
    %190 = vmatpush1.xpose.msra.mxu0 0.0
    %191 = vmatprep.subr.mxu0 0.0
    %192 = vmatpush1.xpose.msra.mxu0 0.0
    %193 = vmatprep.subr.mxu0 0.0
    %194 = vmatpush1.xpose.msra.mxu0 0.0
    %195 = vmatprep.subr.mxu0 0.0
    %196 = vmatpush1.xpose.msra.mxu0 0.0
    %197 = vmatprep.subr.mxu0 0.0
    %198 = vmatpush1.xpose.msra.mxu0 0.0
    %199 = vmatprep.subr.mxu0 0.0
    %200 = vmatpush1.xpose.msra.mxu0 0.0
    %201 = vmatprep.subr.mxu0 0.0
    %202 = vmatpush1.xpose.msra.mxu0 0.0
    %203 = vmatprep.subr.mxu0 0.0
    %204 = vmatpush1.xpose.msra.mxu0 0.0
    %205 = vmatprep.subr.mxu0 0.0
    %206 = vmatpush1.xpose.msra.mxu0 0.0
    %207 = vmatprep.subr.mxu0 0.0
    %208 = vmatpush1.xpose.msra.mxu0 %v177
    %209 = vmatprep.subr.mxu0 0.0
    %210 = vmatpush1.xpose.msra.mxu0 %v175
    %211 = vmatprep.subr.mxu0 0.0
    %212 = vmatpush2.xpose.msra.mxu0 0.0
    %213 = vmatprep.subr.mxu0 0.0
    %214 = vmatpush2.xpose.msra.mxu0 0.0
    %215 = vmatprep.subr.mxu0 0.0
    %216 = vmatpush2.xpose.msra.mxu0 0.0
    %217 = vmatprep.subr.mxu0 0.0
    %218 = vmatpush2.xpose.msra.mxu0 0.0
    %219 = vmatprep.subr.mxu0 0.0
    %220 = vmatpush2.xpose.msra.mxu0 0.0
    %221 = vmatprep.subr.mxu0 0.0
    %222 = vmatpush2.xpose.msra.mxu0 0.0
    %223 = vmatprep.subr.mxu0 0.0
    %224 = vmatpush2.xpose.msra.mxu0 0.0
    %225 = vmatprep.subr.mxu0 0.0
    %226 = vmatpush2.xpose.msra.mxu0 0.0
    %227 = vmatprep.subr.mxu0 0.0
    %228 = vmatpush2.xpose.msra.mxu0 0.0
    %229 = vmatprep.subr.mxu0 0.0
    %230 = vmatpush2.xpose.msra.mxu0 0.0
    %231 = vmatprep.subr.mxu0 0.0
    %232 = vmatpush2.xpose.msra.mxu0 0.0
    %233 = vmatprep.subr.mxu0 0.0
    %234 = vmatpush2.xpose.msra.mxu0 0.0
    %235 = vmatprep.subr.mxu0 0.0
    %236 = vmatpush2.xpose.msra.mxu0 0.0
    %237 = vmatprep.subr.mxu0 0.0
    %238 = vmatpush2.xpose.msra.mxu0 0.0
    %239 = vmatprep.subr.mxu0 0.0
    %240 = vmatpush2.xpose.msra.mxu0 0.0
    %241 = vmatprep.subr.mxu0 0.0
    %242 = vmatpush2.xpose.msra.mxu0 0.0
    %243 = vmatprep.mubr.f32.mxu0 0.0
    %244 = vmatmul.mubr.f32.gmra.mxu0 %v171
    %v245 = vpop.f32.mrf.mxu0
    %v246 = vadd.f32 %v162, %v245
    %v247 = vpop.f32.mrf.mxu0
    %248 = vmatprep.mubr.f32.mxu0 0.0
    %249 = vmatmul.mubr.f32.gmra.mxu0 %v173
    %v250 = vpop.f32.mrf.mxu0
    %v251 = vadd.f32 %v163, %v250
    %v252 = vpop.f32.mrf.mxu0
    %253 = vdwg.mxu0
    %vm254 = vcmask 130048
    %v255 = vsel %vm254, %v246, -inf
    %256 = vmax.xlane.f32.xlu0 %v255
    %v257 = vpop.xlane.xlu0 %256
    %v258 = vsel %vm254, %v251, -inf
    %259 = vmax.xlane.f32.xlu0 %v258
    %v260 = vpop.xlane.xlu0 %259
    %v261 = vsub.f32 %v246, %v257
    %v262 = vsub.f32 %v251, %v260
    %v263 = vmul.f32 %v261, 1.442695
    %v264 = vpow.pop %v263
    %v265 = vmul.f32 %v262, 1.442695
    %v266 = vpow.pop %v265
    %v267 = vsel %vm254, %v264, 0.0
    %268 = vadd.xlane.f32.xlu0 %v267
    %v269 = vpop.xlane.xlu0 %268
    %v270 = vsel %vm254, %v266, 0.0
    %271 = vadd.xlane.f32.xlu0 %v270
    %v272 = vpop.xlane.xlu0 %271
    %v273 = vrcp.pop %v269
    %v274 = vrcp.pop %v272
    %v275 = vmul.f32 %v264, %v273
    %v276 = vmul.f32 %v266, %v274
    %277 = vrot.lane.b32.xlu0 %v139, 64
    %v278 = vpop.permute.xlu0 %277
    %279 = vrot.lane.b32.xlu0 %v144, 64
    %v280 = vpop.permute.xlu0 %279
    %v284 = vsel %vm254, %v275, 0
    %v287 = vsel %vm254, %v276, 0
    %289 = vmatprep.subr.mxu0 0.0
    %290 = vmatpush1.msra.mxu0 0.0
    %291 = vmatprep.subr.mxu0 0.0
    %292 = vmatpush1.msra.mxu0 0.0
    %293 = vmatprep.subr.mxu0 0.0
    %294 = vmatpush1.msra.mxu0 0.0
    %295 = vmatprep.subr.mxu0 0.0
    %296 = vmatpush1.msra.mxu0 0.0
    %297 = vmatprep.subr.mxu0 0.0
    %298 = vmatpush1.msra.mxu0 0.0
    %299 = vmatprep.subr.mxu0 0.0
    %300 = vmatpush1.msra.mxu0 0.0
    %301 = vmatprep.subr.mxu0 0.0
    %302 = vmatpush1.msra.mxu0 0.0
    %303 = vmatprep.subr.mxu0 0.0
    %304 = vmatpush1.msra.mxu0 0.0
    %305 = vmatprep.subr.mxu0 0.0
    %306 = vmatpush1.msra.mxu0 0.0
    %307 = vmatprep.subr.mxu0 0.0
    %308 = vmatpush1.msra.mxu0 0.0
    %309 = vmatprep.subr.mxu0 0.0
    %310 = vmatpush1.msra.mxu0 0.0
    %311 = vmatprep.subr.mxu0 0.0
    %312 = vmatpush1.msra.mxu0 0.0
    %313 = vmatprep.subr.mxu0 0.0
    %314 = vmatpush1.msra.mxu0 0.0
    %315 = vmatprep.subr.mxu0 0.0
    %316 = vmatpush1.msra.mxu0 0.0
    %317 = vmatprep.subr.mxu0 0.0
    %318 = vmatpush1.msra.mxu0 %v280
    %319 = vmatprep.subr.mxu0 0.0
    %320 = vmatpush1.msra.mxu0 %v278
    %321 = vmatprep.subr.mxu0 0.0
    %322 = vmatpush2.msra.mxu0 0.0
    %323 = vmatprep.subr.mxu0 0.0
    %324 = vmatpush2.msra.mxu0 0.0
    %325 = vmatprep.subr.mxu0 0.0
    %326 = vmatpush2.msra.mxu0 0.0
    %327 = vmatprep.subr.mxu0 0.0
    %328 = vmatpush2.msra.mxu0 0.0
    %329 = vmatprep.subr.mxu0 0.0
    %330 = vmatpush2.msra.mxu0 0.0
    %331 = vmatprep.subr.mxu0 0.0
    %332 = vmatpush2.msra.mxu0 0.0
    %333 = vmatprep.subr.mxu0 0.0
    %334 = vmatpush2.msra.mxu0 0.0
    %335 = vmatprep.subr.mxu0 0.0
    %336 = vmatpush2.msra.mxu0 0.0
    %337 = vmatprep.subr.mxu0 0.0
    %338 = vmatpush2.msra.mxu0 0.0
    %339 = vmatprep.subr.mxu0 0.0
    %340 = vmatpush2.msra.mxu0 0.0
    %341 = vmatprep.subr.mxu0 0.0
    %342 = vmatpush2.msra.mxu0 0.0
    %343 = vmatprep.subr.mxu0 0.0
    %344 = vmatpush2.msra.mxu0 0.0
    %345 = vmatprep.subr.mxu0 0.0
    %346 = vmatpush2.msra.mxu0 0.0
    %347 = vmatprep.subr.mxu0 0.0
    %348 = vmatpush2.msra.mxu0 0.0
    %349 = vmatprep.subr.mxu0 0.0
    %350 = vmatpush2.msra.mxu0 0.0
    %351 = vmatprep.subr.mxu0 0.0
    %352 = vmatpush2.msra.mxu0 0.0
    %353 = vmatprep.mubr.f32.mxu0 0.0
    %354 = vmatmul.mubr.f32.gmra.mxu0 %v284
    %v355 = vpop.f32.mrf.mxu0
    %v356 = vadd.f32 0.0, %v355
    %v357 = vpop.f32.mrf.mxu0
    %358 = vmatprep.mubr.f32.mxu0 0.0
    %359 = vmatmul.mubr.f32.gmra.mxu0 %v287
    %v360 = vpop.f32.mrf.mxu0
    %v361 = vadd.f32 0.0, %v360
    %v362 = vpop.f32.mrf.mxu0
    %363 = vdwg.mxu0
    %364 = vrot.lane.b32.xlu0 %v139, 120
    %v365 = vpop.permute.xlu0 %364
    %366 = vrot.lane.b32.xlu0 %v144, 120
    %v367 = vpop.permute.xlu0 %366
    %368 = vrot.lane.b32.xlu0 %v139, 88
    %v369 = vpop.permute.xlu0 %368
    %370 = vrot.lane.b32.xlu0 %v144, 88
    %v371 = vpop.permute.xlu0 %370
    %v372 = vsel %vm170, %v365, 0
    %v374 = vsel %vm170, %v367, 0
    %v376 = vsel %vm170, %v369, 0
    %v378 = vsel %vm170, %v371, 0
    %380 = vmatprep.subr.mxu0 0.0
    %381 = vmatpush1.xpose.msra.mxu0 0.0
    %382 = vmatprep.subr.mxu0 0.0
    %383 = vmatpush1.xpose.msra.mxu0 0.0
    %384 = vmatprep.subr.mxu0 0.0
    %385 = vmatpush1.xpose.msra.mxu0 0.0
    %386 = vmatprep.subr.mxu0 0.0
    %387 = vmatpush1.xpose.msra.mxu0 0.0
    %388 = vmatprep.subr.mxu0 0.0
    %389 = vmatpush1.xpose.msra.mxu0 0.0
    %390 = vmatprep.subr.mxu0 0.0
    %391 = vmatpush1.xpose.msra.mxu0 0.0
    %392 = vmatprep.subr.mxu0 0.0
    %393 = vmatpush1.xpose.msra.mxu0 0.0
    %394 = vmatprep.subr.mxu0 0.0
    %395 = vmatpush1.xpose.msra.mxu0 0.0
    %396 = vmatprep.subr.mxu0 0.0
    %397 = vmatpush1.xpose.msra.mxu0 0.0
    %398 = vmatprep.subr.mxu0 0.0
    %399 = vmatpush1.xpose.msra.mxu0 0.0
    %400 = vmatprep.subr.mxu0 0.0
    %401 = vmatpush1.xpose.msra.mxu0 0.0
    %402 = vmatprep.subr.mxu0 0.0
    %403 = vmatpush1.xpose.msra.mxu0 0.0
    %404 = vmatprep.subr.mxu0 0.0
    %405 = vmatpush1.xpose.msra.mxu0 0.0
    %406 = vmatprep.subr.mxu0 0.0
    %407 = vmatpush1.xpose.msra.mxu0 0.0
    %408 = vmatprep.subr.mxu0 0.0
    %409 = vmatpush1.xpose.msra.mxu0 %v378
    %410 = vmatprep.subr.mxu0 0.0
    %411 = vmatpush1.xpose.msra.mxu0 %v376
    %412 = vmatprep.subr.mxu0 0.0
    %413 = vmatpush2.xpose.msra.mxu0 0.0
    %414 = vmatprep.subr.mxu0 0.0
    %415 = vmatpush2.xpose.msra.mxu0 0.0
    %416 = vmatprep.subr.mxu0 0.0
    %417 = vmatpush2.xpose.msra.mxu0 0.0
    %418 = vmatprep.subr.mxu0 0.0
    %419 = vmatpush2.xpose.msra.mxu0 0.0
    %420 = vmatprep.subr.mxu0 0.0
    %421 = vmatpush2.xpose.msra.mxu0 0.0
    %422 = vmatprep.subr.mxu0 0.0
    %423 = vmatpush2.xpose.msra.mxu0 0.0
    %424 = vmatprep.subr.mxu0 0.0
    %425 = vmatpush2.xpose.msra.mxu0 0.0
    %426 = vmatprep.subr.mxu0 0.0
    %427 = vmatpush2.xpose.msra.mxu0 0.0
    %428 = vmatprep.subr.mxu0 0.0
    %429 = vmatpush2.xpose.msra.mxu0 0.0
    %430 = vmatprep.subr.mxu0 0.0
    %431 = vmatpush2.xpose.msra.mxu0 0.0
    %432 = vmatprep.subr.mxu0 0.0
    %433 = vmatpush2.xpose.msra.mxu0 0.0
    %434 = vmatprep.subr.mxu0 0.0
    %435 = vmatpush2.xpose.msra.mxu0 0.0
    %436 = vmatprep.subr.mxu0 0.0
    %437 = vmatpush2.xpose.msra.mxu0 0.0
    %438 = vmatprep.subr.mxu0 0.0
    %439 = vmatpush2.xpose.msra.mxu0 0.0
    %440 = vmatprep.subr.mxu0 0.0
    %441 = vmatpush2.xpose.msra.mxu0 0.0
    %442 = vmatprep.subr.mxu0 0.0
    %443 = vmatpush2.xpose.msra.mxu0 0.0
    %444 = vmatprep.mubr.f32.mxu0 0.0
    %445 = vmatmul.mubr.f32.gmra.mxu0 %v372
    %v446 = vpop.f32.mrf.mxu0
    %v447 = vadd.f32 %v162, %v446
    %v448 = vpop.f32.mrf.mxu0
    %449 = vmatprep.mubr.f32.mxu0 0.0
    %450 = vmatmul.mubr.f32.gmra.mxu0 %v374
    %v451 = vpop.f32.mrf.mxu0
    %v452 = vadd.f32 %v163, %v451
    %v453 = vpop.f32.mrf.mxu0
    %454 = vdwg.mxu0
    %v455 = vsel %vm254, %v447, -inf
    %456 = vmax.xlane.f32.xlu0 %v455
    %v457 = vpop.xlane.xlu0 %456
    %v458 = vsel %vm254, %v452, -inf
    %459 = vmax.xlane.f32.xlu0 %v458
    %v460 = vpop.xlane.xlu0 %459
    %v461 = vsub.f32 %v447, %v457
    %v462 = vsub.f32 %v452, %v460
    %v463 = vmul.f32 %v461, 1.442695
    %v464 = vpow.pop %v463
    %v465 = vmul.f32 %v462, 1.442695
    %v466 = vpow.pop %v465
    %v467 = vsel %vm254, %v464, 0.0
    %468 = vadd.xlane.f32.xlu0 %v467
    %v469 = vpop.xlane.xlu0 %468
    %v470 = vsel %vm254, %v466, 0.0
    %471 = vadd.xlane.f32.xlu0 %v470
    %v472 = vpop.xlane.xlu0 %471
    %v473 = vrcp.pop %v469
    %v474 = vrcp.pop %v472
    %v475 = vmul.f32 %v464, %v473
    %v476 = vmul.f32 %v466, %v474
    %477 = vrot.lane.b32.xlu0 %v139, 56
    %v478 = vpop.permute.xlu0 %477
    %479 = vrot.lane.b32.xlu0 %v144, 56
    %v480 = vpop.permute.xlu0 %479
    %v484 = vsel %vm254, %v475, 0
    %v487 = vsel %vm254, %v476, 0
    %489 = vmatprep.subr.mxu0 0.0
    %490 = vmatpush1.msra.mxu0 0.0
    %491 = vmatprep.subr.mxu0 0.0
    %492 = vmatpush1.msra.mxu0 0.0
    %493 = vmatprep.subr.mxu0 0.0
    %494 = vmatpush1.msra.mxu0 0.0
    %495 = vmatprep.subr.mxu0 0.0
    %496 = vmatpush1.msra.mxu0 0.0
    %497 = vmatprep.subr.mxu0 0.0
    %498 = vmatpush1.msra.mxu0 0.0
    %499 = vmatprep.subr.mxu0 0.0
    %500 = vmatpush1.msra.mxu0 0.0
    %501 = vmatprep.subr.mxu0 0.0
    %502 = vmatpush1.msra.mxu0 0.0
    %503 = vmatprep.subr.mxu0 0.0
    %504 = vmatpush1.msra.mxu0 0.0
    %505 = vmatprep.subr.mxu0 0.0
    %506 = vmatpush1.msra.mxu0 0.0
    %507 = vmatprep.subr.mxu0 0.0
    %508 = vmatpush1.msra.mxu0 0.0
    %509 = vmatprep.subr.mxu0 0.0
    %510 = vmatpush1.msra.mxu0 0.0
    %511 = vmatprep.subr.mxu0 0.0
    %512 = vmatpush1.msra.mxu0 0.0
    %513 = vmatprep.subr.mxu0 0.0
    %514 = vmatpush1.msra.mxu0 0.0
    %515 = vmatprep.subr.mxu0 0.0
    %516 = vmatpush1.msra.mxu0 0.0
    %517 = vmatprep.subr.mxu0 0.0
    %518 = vmatpush1.msra.mxu0 %v480
    %519 = vmatprep.subr.mxu0 0.0
    %520 = vmatpush1.msra.mxu0 %v478
    %521 = vmatprep.subr.mxu0 0.0
    %522 = vmatpush2.msra.mxu0 0.0
    %523 = vmatprep.subr.mxu0 0.0
    %524 = vmatpush2.msra.mxu0 0.0
    %525 = vmatprep.subr.mxu0 0.0
    %526 = vmatpush2.msra.mxu0 0.0
    %527 = vmatprep.subr.mxu0 0.0
    %528 = vmatpush2.msra.mxu0 0.0
    %529 = vmatprep.subr.mxu0 0.0
    %530 = vmatpush2.msra.mxu0 0.0
    %531 = vmatprep.subr.mxu0 0.0
    %532 = vmatpush2.msra.mxu0 0.0
    %533 = vmatprep.subr.mxu0 0.0
    %534 = vmatpush2.msra.mxu0 0.0
    %535 = vmatprep.subr.mxu0 0.0
    %536 = vmatpush2.msra.mxu0 0.0
    %537 = vmatprep.subr.mxu0 0.0
    %538 = vmatpush2.msra.mxu0 0.0
    %539 = vmatprep.subr.mxu0 0.0
    %540 = vmatpush2.msra.mxu0 0.0
    %541 = vmatprep.subr.mxu0 0.0
    %542 = vmatpush2.msra.mxu0 0.0
    %543 = vmatprep.subr.mxu0 0.0
    %544 = vmatpush2.msra.mxu0 0.0
    %545 = vmatprep.subr.mxu0 0.0
    %546 = vmatpush2.msra.mxu0 0.0
    %547 = vmatprep.subr.mxu0 0.0
    %548 = vmatpush2.msra.mxu0 0.0
    %549 = vmatprep.subr.mxu0 0.0
    %550 = vmatpush2.msra.mxu0 0.0
    %551 = vmatprep.subr.mxu0 0.0
    %552 = vmatpush2.msra.mxu0 0.0
    %553 = vmatprep.mubr.f32.mxu0 0.0
    %554 = vmatmul.mubr.f32.gmra.mxu0 %v484
    %v555 = vpop.f32.mrf.mxu0
    %v556 = vadd.f32 0.0, %v555
    %v557 = vpop.f32.mrf.mxu0
    %558 = vmatprep.mubr.f32.mxu0 0.0
    %559 = vmatmul.mubr.f32.gmra.mxu0 %v487
    %v560 = vpop.f32.mrf.mxu0
    %v561 = vadd.f32 0.0, %v560
    %v562 = vpop.f32.mrf.mxu0
    %563 = vdwg.mxu0
    %564 = vrot.lane.b32.xlu0 %v139, 112
    %v565 = vpop.permute.xlu0 %564
    %566 = vrot.lane.b32.xlu0 %v144, 112
    %v567 = vpop.permute.xlu0 %566
    %568 = vrot.lane.b32.xlu0 %v139, 80
    %v569 = vpop.permute.xlu0 %568
    %570 = vrot.lane.b32.xlu0 %v144, 80
    %v571 = vpop.permute.xlu0 %570
    %v572 = vsel %vm170, %v565, 0
    %v574 = vsel %vm170, %v567, 0
    %v576 = vsel %vm170, %v569, 0
    %v578 = vsel %vm170, %v571, 0
    %580 = vmatprep.subr.mxu0 0.0
    %581 = vmatpush1.xpose.msra.mxu0 0.0
    %582 = vmatprep.subr.mxu0 0.0
    %583 = vmatpush1.xpose.msra.mxu0 0.0
    %584 = vmatprep.subr.mxu0 0.0
    %585 = vmatpush1.xpose.msra.mxu0 0.0
    %586 = vmatprep.subr.mxu0 0.0
    %587 = vmatpush1.xpose.msra.mxu0 0.0
    %588 = vmatprep.subr.mxu0 0.0
    %589 = vmatpush1.xpose.msra.mxu0 0.0
    %590 = vmatprep.subr.mxu0 0.0
    %591 = vmatpush1.xpose.msra.mxu0 0.0
    %592 = vmatprep.subr.mxu0 0.0
    %593 = vmatpush1.xpose.msra.mxu0 0.0
    %594 = vmatprep.subr.mxu0 0.0
    %595 = vmatpush1.xpose.msra.mxu0 0.0
    %596 = vmatprep.subr.mxu0 0.0
    %597 = vmatpush1.xpose.msra.mxu0 0.0
    %598 = vmatprep.subr.mxu0 0.0
    %599 = vmatpush1.xpose.msra.mxu0 0.0
    %600 = vmatprep.subr.mxu0 0.0
    %601 = vmatpush1.xpose.msra.mxu0 0.0
    %602 = vmatprep.subr.mxu0 0.0
    %603 = vmatpush1.xpose.msra.mxu0 0.0
    %604 = vmatprep.subr.mxu0 0.0
    %605 = vmatpush1.xpose.msra.mxu0 0.0
    %606 = vmatprep.subr.mxu0 0.0
    %607 = vmatpush1.xpose.msra.mxu0 0.0
    %608 = vmatprep.subr.mxu0 0.0
    %609 = vmatpush1.xpose.msra.mxu0 %v578
    %610 = vmatprep.subr.mxu0 0.0
    %611 = vmatpush1.xpose.msra.mxu0 %v576
    %612 = vmatprep.subr.mxu0 0.0
    %613 = vmatpush2.xpose.msra.mxu0 0.0
    %614 = vmatprep.subr.mxu0 0.0
    %615 = vmatpush2.xpose.msra.mxu0 0.0
    %616 = vmatprep.subr.mxu0 0.0
    %617 = vmatpush2.xpose.msra.mxu0 0.0
    %618 = vmatprep.subr.mxu0 0.0
    %619 = vmatpush2.xpose.msra.mxu0 0.0
    %620 = vmatprep.subr.mxu0 0.0
    %621 = vmatpush2.xpose.msra.mxu0 0.0
    %622 = vmatprep.subr.mxu0 0.0
    %623 = vmatpush2.xpose.msra.mxu0 0.0
    %624 = vmatprep.subr.mxu0 0.0
    %625 = vmatpush2.xpose.msra.mxu0 0.0
    %626 = vmatprep.subr.mxu0 0.0
    %627 = vmatpush2.xpose.msra.mxu0 0.0
    %628 = vmatprep.subr.mxu0 0.0
    %629 = vmatpush2.xpose.msra.mxu0 0.0
    %630 = vmatprep.subr.mxu0 0.0
    %631 = vmatpush2.xpose.msra.mxu0 0.0
    %632 = vmatprep.subr.mxu0 0.0
    %633 = vmatpush2.xpose.msra.mxu0 0.0
    %634 = vmatprep.subr.mxu0 0.0
    %635 = vmatpush2.xpose.msra.mxu0 0.0
    %636 = vmatprep.subr.mxu0 0.0
    %637 = vmatpush2.xpose.msra.mxu0 0.0
    %638 = vmatprep.subr.mxu0 0.0
    %639 = vmatpush2.xpose.msra.mxu0 0.0
    %640 = vmatprep.subr.mxu0 0.0
    %641 = vmatpush2.xpose.msra.mxu0 0.0
    %642 = vmatprep.subr.mxu0 0.0
    %643 = vmatpush2.xpose.msra.mxu0 0.0
    %644 = vmatprep.mubr.f32.mxu0 0.0
    %645 = vmatmul.mubr.f32.gmra.mxu0 %v572
    %v646 = vpop.f32.mrf.mxu0
    %v647 = vadd.f32 %v162, %v646
    %v648 = vpop.f32.mrf.mxu0
    %649 = vmatprep.mubr.f32.mxu0 0.0
    %650 = vmatmul.mubr.f32.gmra.mxu0 %v574
    %v651 = vpop.f32.mrf.mxu0
    %v652 = vadd.f32 %v163, %v651
    %v653 = vpop.f32.mrf.mxu0
    %654 = vdwg.mxu0
    %v655 = vsel %vm254, %v647, -inf
    %656 = vmax.xlane.f32.xlu0 %v655
    %v657 = vpop.xlane.xlu0 %656
    %v658 = vsel %vm254, %v652, -inf
    %659 = vmax.xlane.f32.xlu0 %v658
    %v660 = vpop.xlane.xlu0 %659
    %v661 = vsub.f32 %v647, %v657
    %v662 = vsub.f32 %v652, %v660
    %v663 = vmul.f32 %v661, 1.442695
    %v664 = vpow.pop %v663
    %v665 = vmul.f32 %v662, 1.442695
    %v666 = vpow.pop %v665
    %v667 = vsel %vm254, %v664, 0.0
    %668 = vadd.xlane.f32.xlu0 %v667
    %v669 = vpop.xlane.xlu0 %668
    %v670 = vsel %vm254, %v666, 0.0
    %671 = vadd.xlane.f32.xlu0 %v670
    %v672 = vpop.xlane.xlu0 %671
    %v673 = vrcp.pop %v669
    %v674 = vrcp.pop %v672
    %v675 = vmul.f32 %v664, %v673
    %v676 = vmul.f32 %v666, %v674
    %677 = vrot.lane.b32.xlu0 %v139, 48
    %v678 = vpop.permute.xlu0 %677
    %679 = vrot.lane.b32.xlu0 %v144, 48
    %v680 = vpop.permute.xlu0 %679
    %v684 = vsel %vm254, %v675, 0
    %v687 = vsel %vm254, %v676, 0
    %689 = vmatprep.subr.mxu0 0.0
    %690 = vmatpush1.msra.mxu0 0.0
    %691 = vmatprep.subr.mxu0 0.0
    %692 = vmatpush1.msra.mxu0 0.0
    %693 = vmatprep.subr.mxu0 0.0
    %694 = vmatpush1.msra.mxu0 0.0
    %695 = vmatprep.subr.mxu0 0.0
    %696 = vmatpush1.msra.mxu0 0.0
    %697 = vmatprep.subr.mxu0 0.0
    %698 = vmatpush1.msra.mxu0 0.0
    %699 = vmatprep.subr.mxu0 0.0
    %700 = vmatpush1.msra.mxu0 0.0
    %701 = vmatprep.subr.mxu0 0.0
    %702 = vmatpush1.msra.mxu0 0.0
    %703 = vmatprep.subr.mxu0 0.0
    %704 = vmatpush1.msra.mxu0 0.0
    %705 = vmatprep.subr.mxu0 0.0
    %706 = vmatpush1.msra.mxu0 0.0
    %707 = vmatprep.subr.mxu0 0.0
    %708 = vmatpush1.msra.mxu0 0.0
    %709 = vmatprep.subr.mxu0 0.0
    %710 = vmatpush1.msra.mxu0 0.0
    %711 = vmatprep.subr.mxu0 0.0
    %712 = vmatpush1.msra.mxu0 0.0
    %713 = vmatprep.subr.mxu0 0.0
    %714 = vmatpush1.msra.mxu0 0.0
    %715 = vmatprep.subr.mxu0 0.0
    %716 = vmatpush1.msra.mxu0 0.0
    %717 = vmatprep.subr.mxu0 0.0
    %718 = vmatpush1.msra.mxu0 %v680
    %719 = vmatprep.subr.mxu0 0.0
    %720 = vmatpush1.msra.mxu0 %v678
    %721 = vmatprep.subr.mxu0 0.0
    %722 = vmatpush2.msra.mxu0 0.0
    %723 = vmatprep.subr.mxu0 0.0
    %724 = vmatpush2.msra.mxu0 0.0
    %725 = vmatprep.subr.mxu0 0.0
    %726 = vmatpush2.msra.mxu0 0.0
    %727 = vmatprep.subr.mxu0 0.0
    %728 = vmatpush2.msra.mxu0 0.0
    %729 = vmatprep.subr.mxu0 0.0
    %730 = vmatpush2.msra.mxu0 0.0
    %731 = vmatprep.subr.mxu0 0.0
    %732 = vmatpush2.msra.mxu0 0.0
    %733 = vmatprep.subr.mxu0 0.0
    %734 = vmatpush2.msra.mxu0 0.0
    %735 = vmatprep.subr.mxu0 0.0
    %736 = vmatpush2.msra.mxu0 0.0
    %737 = vmatprep.subr.mxu0 0.0
    %738 = vmatpush2.msra.mxu0 0.0
    %739 = vmatprep.subr.mxu0 0.0
    %740 = vmatpush2.msra.mxu0 0.0
    %741 = vmatprep.subr.mxu0 0.0
    %742 = vmatpush2.msra.mxu0 0.0
    %743 = vmatprep.subr.mxu0 0.0
    %744 = vmatpush2.msra.mxu0 0.0
    %745 = vmatprep.subr.mxu0 0.0
    %746 = vmatpush2.msra.mxu0 0.0
    %747 = vmatprep.subr.mxu0 0.0
    %748 = vmatpush2.msra.mxu0 0.0
    %749 = vmatprep.subr.mxu0 0.0
    %750 = vmatpush2.msra.mxu0 0.0
    %751 = vmatprep.subr.mxu0 0.0
    %752 = vmatpush2.msra.mxu0 0.0
    %753 = vmatprep.mubr.f32.mxu0 0.0
    %754 = vmatmul.mubr.f32.gmra.mxu0 %v684
    %v755 = vpop.f32.mrf.mxu0
    %v756 = vadd.f32 0.0, %v755
    %v757 = vpop.f32.mrf.mxu0
    %758 = vmatprep.mubr.f32.mxu0 0.0
    %759 = vmatmul.mubr.f32.gmra.mxu0 %v687
    %v760 = vpop.f32.mrf.mxu0
    %v761 = vadd.f32 0.0, %v760
    %v762 = vpop.f32.mrf.mxu0
    %763 = vdwg.mxu0
    %764 = vrot.lane.b32.xlu0 %v139, 104
    %v765 = vpop.permute.xlu0 %764
    %766 = vrot.lane.b32.xlu0 %v144, 104
    %v767 = vpop.permute.xlu0 %766
    %768 = vrot.lane.b32.xlu0 %v139, 72
    %v769 = vpop.permute.xlu0 %768
    %770 = vrot.lane.b32.xlu0 %v144, 72
    %v771 = vpop.permute.xlu0 %770
    %v772 = vsel %vm170, %v765, 0
    %v774 = vsel %vm170, %v767, 0
    %v776 = vsel %vm170, %v769, 0
    %v778 = vsel %vm170, %v771, 0
    %780 = vmatprep.subr.mxu0 0.0
    %781 = vmatpush1.xpose.msra.mxu0 0.0
    %782 = vmatprep.subr.mxu0 0.0
    %783 = vmatpush1.xpose.msra.mxu0 0.0
    %784 = vmatprep.subr.mxu0 0.0
    %785 = vmatpush1.xpose.msra.mxu0 0.0
    %786 = vmatprep.subr.mxu0 0.0
    %787 = vmatpush1.xpose.msra.mxu0 0.0
    %788 = vmatprep.subr.mxu0 0.0
    %789 = vmatpush1.xpose.msra.mxu0 0.0
    %790 = vmatprep.subr.mxu0 0.0
    %791 = vmatpush1.xpose.msra.mxu0 0.0
    %792 = vmatprep.subr.mxu0 0.0
    %793 = vmatpush1.xpose.msra.mxu0 0.0
    %794 = vmatprep.subr.mxu0 0.0
    %795 = vmatpush1.xpose.msra.mxu0 0.0
    %796 = vmatprep.subr.mxu0 0.0
    %797 = vmatpush1.xpose.msra.mxu0 0.0
    %798 = vmatprep.subr.mxu0 0.0
    %799 = vmatpush1.xpose.msra.mxu0 0.0
    %800 = vmatprep.subr.mxu0 0.0
    %801 = vmatpush1.xpose.msra.mxu0 0.0
    %802 = vmatprep.subr.mxu0 0.0
    %803 = vmatpush1.xpose.msra.mxu0 0.0
    %804 = vmatprep.subr.mxu0 0.0
    %805 = vmatpush1.xpose.msra.mxu0 0.0
    %806 = vmatprep.subr.mxu0 0.0
    %807 = vmatpush1.xpose.msra.mxu0 0.0
    %808 = vmatprep.subr.mxu0 0.0
    %809 = vmatpush1.xpose.msra.mxu0 %v778
    %810 = vmatprep.subr.mxu0 0.0
    %811 = vmatpush1.xpose.msra.mxu0 %v776
    %812 = vmatprep.subr.mxu0 0.0
    %813 = vmatpush2.xpose.msra.mxu0 0.0
    %814 = vmatprep.subr.mxu0 0.0
    %815 = vmatpush2.xpose.msra.mxu0 0.0
    %816 = vmatprep.subr.mxu0 0.0
    %817 = vmatpush2.xpose.msra.mxu0 0.0
    %818 = vmatprep.subr.mxu0 0.0
    %819 = vmatpush2.xpose.msra.mxu0 0.0
    %820 = vmatprep.subr.mxu0 0.0
    %821 = vmatpush2.xpose.msra.mxu0 0.0
    %822 = vmatprep.subr.mxu0 0.0
    %823 = vmatpush2.xpose.msra.mxu0 0.0
    %824 = vmatprep.subr.mxu0 0.0
    %825 = vmatpush2.xpose.msra.mxu0 0.0
    %826 = vmatprep.subr.mxu0 0.0
    %827 = vmatpush2.xpose.msra.mxu0 0.0
    %828 = vmatprep.subr.mxu0 0.0
    %829 = vmatpush2.xpose.msra.mxu0 0.0
    %830 = vmatprep.subr.mxu0 0.0
    %831 = vmatpush2.xpose.msra.mxu0 0.0
    %832 = vmatprep.subr.mxu0 0.0
    %833 = vmatpush2.xpose.msra.mxu0 0.0
    %834 = vmatprep.subr.mxu0 0.0
    %835 = vmatpush2.xpose.msra.mxu0 0.0
    %836 = vmatprep.subr.mxu0 0.0
    %837 = vmatpush2.xpose.msra.mxu0 0.0
    %838 = vmatprep.subr.mxu0 0.0
    %839 = vmatpush2.xpose.msra.mxu0 0.0
    %840 = vmatprep.subr.mxu0 0.0
    %841 = vmatpush2.xpose.msra.mxu0 0.0
    %842 = vmatprep.subr.mxu0 0.0
    %843 = vmatpush2.xpose.msra.mxu0 0.0
    %844 = vmatprep.mubr.f32.mxu0 0.0
    %845 = vmatmul.mubr.f32.gmra.mxu0 %v772
    %v846 = vpop.f32.mrf.mxu0
    %v847 = vadd.f32 %v162, %v846
    %v848 = vpop.f32.mrf.mxu0
    %849 = vmatprep.mubr.f32.mxu0 0.0
    %850 = vmatmul.mubr.f32.gmra.mxu0 %v774
    %v851 = vpop.f32.mrf.mxu0
    %v852 = vadd.f32 %v163, %v851
    %v853 = vpop.f32.mrf.mxu0
    %854 = vdwg.mxu0
    %v855 = vsel %vm254, %v847, -inf
    %856 = vmax.xlane.f32.xlu0 %v855
    %v857 = vpop.xlane.xlu0 %856
    %v858 = vsel %vm254, %v852, -inf
    %859 = vmax.xlane.f32.xlu0 %v858
    %v860 = vpop.xlane.xlu0 %859
    %v861 = vsub.f32 %v847, %v857
    %v862 = vsub.f32 %v852, %v860
    %v863 = vmul.f32 %v861, 1.442695
    %v864 = vpow.pop %v863
    %v865 = vmul.f32 %v862, 1.442695
    %v866 = vpow.pop %v865
    %v867 = vsel %vm254, %v864, 0.0
    %868 = vadd.xlane.f32.xlu0 %v867
    %v869 = vpop.xlane.xlu0 %868
    %v870 = vsel %vm254, %v866, 0.0
    %871 = vadd.xlane.f32.xlu0 %v870
    %v872 = vpop.xlane.xlu0 %871
    %v873 = vrcp.pop %v869
    %v874 = vrcp.pop %v872
    %v875 = vmul.f32 %v864, %v873
    %v876 = vmul.f32 %v866, %v874
    %877 = vrot.lane.b32.xlu0 %v139, 40
    %v878 = vpop.permute.xlu0 %877
    %879 = vrot.lane.b32.xlu0 %v144, 40
    %v880 = vpop.permute.xlu0 %879
    %v884 = vsel %vm254, %v875, 0
    %v887 = vsel %vm254, %v876, 0
    %889 = vmatprep.subr.mxu0 0.0
    %890 = vmatpush1.msra.mxu0 0.0
    %891 = vmatprep.subr.mxu0 0.0
    %892 = vmatpush1.msra.mxu0 0.0
    %893 = vmatprep.subr.mxu0 0.0
    %894 = vmatpush1.msra.mxu0 0.0
    %895 = vmatprep.subr.mxu0 0.0
    %896 = vmatpush1.msra.mxu0 0.0
    %897 = vmatprep.subr.mxu0 0.0
    %898 = vmatpush1.msra.mxu0 0.0
    %899 = vmatprep.subr.mxu0 0.0
    %900 = vmatpush1.msra.mxu0 0.0
    %901 = vmatprep.subr.mxu0 0.0
    %902 = vmatpush1.msra.mxu0 0.0
    %903 = vmatprep.subr.mxu0 0.0
    %904 = vmatpush1.msra.mxu0 0.0
    %905 = vmatprep.subr.mxu0 0.0
    %906 = vmatpush1.msra.mxu0 0.0
    %907 = vmatprep.subr.mxu0 0.0
    %908 = vmatpush1.msra.mxu0 0.0
    %909 = vmatprep.subr.mxu0 0.0
    %910 = vmatpush1.msra.mxu0 0.0
    %911 = vmatprep.subr.mxu0 0.0
    %912 = vmatpush1.msra.mxu0 0.0
    %913 = vmatprep.subr.mxu0 0.0
    %914 = vmatpush1.msra.mxu0 0.0
    %915 = vmatprep.subr.mxu0 0.0
    %916 = vmatpush1.msra.mxu0 0.0
    %917 = vmatprep.subr.mxu0 0.0
    %918 = vmatpush1.msra.mxu0 %v880
    %919 = vmatprep.subr.mxu0 0.0
    %920 = vmatpush1.msra.mxu0 %v878
    %921 = vmatprep.subr.mxu0 0.0
    %922 = vmatpush2.msra.mxu0 0.0
    %923 = vmatprep.subr.mxu0 0.0
    %924 = vmatpush2.msra.mxu0 0.0
    %925 = vmatprep.subr.mxu0 0.0
    %926 = vmatpush2.msra.mxu0 0.0
    %927 = vmatprep.subr.mxu0 0.0
    %928 = vmatpush2.msra.mxu0 0.0
    %929 = vmatprep.subr.mxu0 0.0
    %930 = vmatpush2.msra.mxu0 0.0
    %931 = vmatprep.subr.mxu0 0.0
    %932 = vmatpush2.msra.mxu0 0.0
    %933 = vmatprep.subr.mxu0 0.0
    %934 = vmatpush2.msra.mxu0 0.0
    %935 = vmatprep.subr.mxu0 0.0
    %936 = vmatpush2.msra.mxu0 0.0
    %937 = vmatprep.subr.mxu0 0.0
    %938 = vmatpush2.msra.mxu0 0.0
    %939 = vmatprep.subr.mxu0 0.0
    %940 = vmatpush2.msra.mxu0 0.0
    %941 = vmatprep.subr.mxu0 0.0
    %942 = vmatpush2.msra.mxu0 0.0
    %943 = vmatprep.subr.mxu0 0.0
    %944 = vmatpush2.msra.mxu0 0.0
    %945 = vmatprep.subr.mxu0 0.0
    %946 = vmatpush2.msra.mxu0 0.0
    %947 = vmatprep.subr.mxu0 0.0
    %948 = vmatpush2.msra.mxu0 0.0
    %949 = vmatprep.subr.mxu0 0.0
    %950 = vmatpush2.msra.mxu0 0.0
    %951 = vmatprep.subr.mxu0 0.0
    %952 = vmatpush2.msra.mxu0 0.0
    %953 = vmatprep.mubr.f32.mxu0 0.0
    %954 = vmatmul.mubr.f32.gmra.mxu0 %v884
    %v955 = vpop.f32.mrf.mxu0
    %v956 = vadd.f32 0.0, %v955
    %v957 = vpop.f32.mrf.mxu0
    %958 = vmatprep.mubr.f32.mxu0 0.0
    %959 = vmatmul.mubr.f32.gmra.mxu0 %v887
    %v960 = vpop.f32.mrf.mxu0
    %v961 = vadd.f32 0.0, %v960
    %v962 = vpop.f32.mrf.mxu0
    %963 = vdwg.mxu0
    %966 = vrot.lane.b32.xlu0 %v556, 8
    %v967 = vpop.permute.xlu0 %966
    %968 = vrot.lane.b32.xlu0 %v561, 8
    %v969 = vpop.permute.xlu0 %968
    %974 = vrot.lane.b32.xlu0 %v756, 16
    %v975 = vpop.permute.xlu0 %974
    %976 = vrot.lane.b32.xlu0 %v761, 16
    %v977 = vpop.permute.xlu0 %976
    %982 = vrot.lane.b32.xlu0 %v956, 24
    %v983 = vpop.permute.xlu0 %982
    %984 = vrot.lane.b32.xlu0 %v961, 24
    %v985 = vpop.permute.xlu0 %984
    %v988 = vsel %vm170, %v356, %v967
    %v989 = vsel %vm170, %v361, %v969
    %v990 = vsel %vm254, %v988, %v975
    %v991 = vsel %vm254, %v989, %v977
    %vm992 = vcmask 195584
    %v993 = vsel %vm992, %v990, %v983
    %v994 = vsel %vm992, %v991, %v985
    %v995 = vld [vmem:[#allocation7] sm:$0xff]
    %v996 = vld [vmem:[#allocation7 + $0x8] sm:$0xff]
    %v997 = vld [vmem:[#allocation7 + $0x10] sm:$0xff]
    %v998 = vld [vmem:[#allocation7 + $0x18] sm:$0xff]
    %v999 = vld [vmem:[%s3] sm:$0x1]
    %v1001 = vlaneseq
    %v1002 = vshrl.u32 %v1001, 7
    %v1003 = vsub.s32 0, %v1002
    %v1004 = vrot.slane %v999, %v1003
    %v1007 = vsel %vm65, %v993, 0
    %v1010 = vsel %vm65, %v994, 0
    %1012 = vmatprep.subr.mxu0 0.0
    %1013 = vmatpush1.msra.mxu0 0.0
    %1014 = vmatprep.subr.mxu0 0.0
    %1015 = vmatpush1.msra.mxu0 0.0
    %1016 = vmatprep.subr.mxu0 0.0
    %1017 = vmatpush1.msra.mxu0 0.0
    %1018 = vmatprep.subr.mxu0 0.0
    %1019 = vmatpush1.msra.mxu0 0.0
    %1020 = vmatprep.subr.mxu0 0.0
    %1021 = vmatpush1.msra.mxu0 0.0
    %1022 = vmatprep.subr.mxu0 0.0
    %1023 = vmatpush1.msra.mxu0 0.0
    %1024 = vmatprep.subr.mxu0 0.0
    %1025 = vmatpush1.msra.mxu0 0.0
    %1026 = vmatprep.subr.mxu0 0.0
    %1027 = vmatpush1.msra.mxu0 0.0
    %1028 = vmatprep.subr.mxu0 0.0
    %1029 = vmatpush1.msra.mxu0 0.0
    %1030 = vmatprep.subr.mxu0 0.0
    %1031 = vmatpush1.msra.mxu0 0.0
    %1032 = vmatprep.subr.mxu0 0.0
    %1033 = vmatpush1.msra.mxu0 0.0
    %1034 = vmatprep.subr.mxu0 0.0
    %1035 = vmatpush1.msra.mxu0 0.0
    %1036 = vmatprep.subr.mxu0 0.0
    %1037 = vmatpush1.msra.mxu0 %v998
    %1038 = vmatprep.subr.mxu0 0.0
    %1039 = vmatpush1.msra.mxu0 %v997
    %1040 = vmatprep.subr.mxu0 0.0
    %1041 = vmatpush1.msra.mxu0 %v996
    %1042 = vmatprep.subr.mxu0 0.0
    %1043 = vmatpush1.msra.mxu0 %v995
    %1044 = vmatprep.subr.mxu0 0.0
    %1045 = vmatpush2.msra.mxu0 0.0
    %1046 = vmatprep.subr.mxu0 0.0
    %1047 = vmatpush2.msra.mxu0 0.0
    %1048 = vmatprep.subr.mxu0 0.0
    %1049 = vmatpush2.msra.mxu0 0.0
    %1050 = vmatprep.subr.mxu0 0.0
    %1051 = vmatpush2.msra.mxu0 0.0
    %1052 = vmatprep.subr.mxu0 0.0
    %1053 = vmatpush2.msra.mxu0 0.0
    %1054 = vmatprep.subr.mxu0 0.0
    %1055 = vmatpush2.msra.mxu0 0.0
    %1056 = vmatprep.subr.mxu0 0.0
    %1057 = vmatpush2.msra.mxu0 0.0
    %1058 = vmatprep.subr.mxu0 0.0
    %1059 = vmatpush2.msra.mxu0 0.0
    %1060 = vmatprep.subr.mxu0 0.0
    %1061 = vmatpush2.msra.mxu0 0.0
    %1062 = vmatprep.subr.mxu0 0.0
    %1063 = vmatpush2.msra.mxu0 0.0
    %1064 = vmatprep.subr.mxu0 0.0
    %1065 = vmatpush2.msra.mxu0 0.0
    %1066 = vmatprep.subr.mxu0 0.0
    %1067 = vmatpush2.msra.mxu0 0.0
    %1068 = vmatprep.subr.mxu0 0.0
    %1069 = vmatpush2.msra.mxu0 0.0
    %1070 = vmatprep.subr.mxu0 0.0
    %1071 = vmatpush2.msra.mxu0 0.0
    %1072 = vmatprep.subr.mxu0 0.0
    %1073 = vmatpush2.msra.mxu0 0.0
    %1074 = vmatprep.subr.mxu0 0.0
    %1075 = vmatpush2.msra.mxu0 0.0
    %1076 = vmatprep.mubr.f32.mxu0 0.0
    %1077 = vmatmul.mubr.f32.gmra.mxu0 %v1007
    %v1078 = vpop.f32.mrf.mxu0
    %v1079 = vadd.f32 %v1004, %v1078
    %v1080 = vpop.f32.mrf.mxu0
    %1081 = vmatprep.mubr.f32.mxu0 0.0
    %1082 = vmatmul.mubr.f32.gmra.mxu0 %v1010
    %v1083 = vpop.f32.mrf.mxu0
    %v1084 = vadd.f32 %v1004, %v1083
    %v1085 = vpop.f32.mrf.mxu0
    %1086 = vdwg.mxu0
    %1087 = vst [vmem:[#allocation8] sm:$0xff] %v1079
    %1088 = vst [vmem:[#allocation8 + $0x8] sm:$0xff] %v1084
    // Predicated region
    $region30: #{tpu_custom_call.1} parent=1 // pred_check
      _
    $region31: #{tpu_custom_call.1} parent=1 // pred_check_branch
      %1090 = sbr.rel (0) target = $region33
    $region32: #{tpu_custom_call.1} parent=1 // pred_region
      %s1092 = ssub.s32 256, 256
      %1093 = vsyncadd [#allocation4], %s1092
      %s1094 = sshll.u32 [#allocation8], 4
      %s1095 = int_to_ptr.vmem [resolvable:$true] %s1094
      %1100 = dma.vmem_to_hbm [thread:$0]  %s1095, 256, %s4, [#allocation4], 128, 128, 8
    $region33: #{tpu_custom_call.1} parent=1 // pred_fallthru
      _
    // Predicated region
    $region34: #{tpu_custom_call.1} parent=1 // pred_check
      _
    $region35: #{tpu_custom_call.1} parent=1 // pred_check_branch
      %1102 = sbr.rel (0) target = $region37
    $region36: #{tpu_custom_call.1} parent=1 // pred_region
      %1103 = dma.done [#allocation4], 256
    $region37: #{tpu_custom_call.1} parent=1 // pred_fallthru
      _
    %1104 = vsyncpa [#allocation3], 1
    %1105 = vsyncpa [#allocation6], 1
    %1106 = vsyncpa [#allocation4], 1

</llo_original>
